<compile_context>
chip_gen: v7x
topology: tpu7x:2x2x1
jax: 0.10.0
libtpu: 0.0.40
codegen_flags: <defaults>
</compile_context>

<pallas_src>
import functools
import math

import jax
import jax.numpy as jnp
from jax.experimental import pallas as pl
from jax.experimental.pallas import tpu as pltpu


def _round_up(x, m):
    return ((x + m - 1) // m) * m


def _pick_tile(padded_dim, max_tile, unit):
    """Largest multiple of `unit` <= max_tile that divides padded_dim.

    padded_dim is always a multiple of `unit`, so this terminates at `unit`
    in the worst case -> zero extra padding beyond the 8/128 rounding.
    """
    t = max(unit, min(max_tile, padded_dim))
    t = (t // unit) * unit
    while padded_dim % t != 0:
        t -= unit
    return t


# ---------------------------------------------------------------------------
# Kernel
# ---------------------------------------------------------------------------
def noisy_linear_kernel(x_ref, wmu_ref, wsig_ref, eps_in_ref, rows_ref,
                        o_ref, acc_ref):
    """One (i, j, k) grid step of y = x @ (Wmu + Wsig * eps_out x eps_in).T + b_eff.

    Shapes inside the kernel (weights already pre-transposed to [K, N]):
      x_ref:      (tm, tk)  input dtype
      wmu/wsig:   (tk, tn)  weight dtype (bf16 default, f32 optional)
      eps_in_ref: (tk, 1)   f32 column factor of the factorized noise
      rows_ref:   (8, tn)   f32; row 0 = eps_out, row 1 = precombined b_eff
      o_ref:      (tm, tn)  output dtype
      acc_ref:    (tm, tn)  f32 scratch accumulator
    """
    k = pl.program_id(2)

    @pl.when(k == 0)
    def _():
        acc_ref[...] = jnp.zeros_like(acc_ref)

    wmu = wmu_ref[...]
    wsig = wsig_ref[...]
    cdt = wmu.dtype  # combine dtype == weight streaming dtype

    eps_in = eps_in_ref[...].astype(cdt)       # (tk, 1)
    eps_out = rows_ref[0:1, :].astype(cdt)     # (1, tn)

    # Reassociated combine: weight_epsilon.T[k, n] == eps_in[k] * eps_out[n],
    # applied as two broadcast muls (no (tk, tn) eps outer-product temp).
    w_eff = (wsig * eps_in) * eps_out + wmu

    # bf16 MXU operands on the fast path; accumulation stays f32.
    x_tile = x_ref[...].astype(cdt)
    acc_ref[...] += jnp.dot(x_tile, w_eff, preferred_element_type=jnp.float32)

    @pl.when(k == pl.num_programs(2) - 1)
    def _():
        b_eff = rows_ref[1:2, :]  # precombined bias (f32), broadcast over tm
        o_ref[...] = (acc_ref[...] + b_eff).astype(o_ref.dtype)


# ---------------------------------------------------------------------------
# Wrapper
# ---------------------------------------------------------------------------
def prepare_noisy_linear(weight_mu, weight_sigma, bias_mu, bias_sigma,
                         eps_in, eps_out, *, weight_dtype=jnp.bfloat16):
    """One-time (per parameter / noise update) preparation of kernel operands.

    Pads weights to 128-multiples, transposes to [Kp, Np], casts to the
    streaming dtype, pre-combines the effective bias and packs the small row
    vectors.  Re-run only after reset_parameters()/reset_noise(); the forward
    itself never touches the full weight matrices outside the kernel.
    """
    N, K = weight_mu.shape
    Kp = _round_up(K, 128)
    Np = _round_up(N, 128)
    pad_w = ((0, Np - N), (0, Kp - K))

    wmu_t = jnp.pad(weight_mu, pad_w).T.astype(weight_dtype)      # [Kp, Np]
    wsig_t = jnp.pad(weight_sigma, pad_w).T.astype(weight_dtype)  # [Kp, Np]

    eps_in_col = jnp.pad(eps_in.astype(jnp.float32), (0, Kp - K)).reshape(Kp, 1)
    eps_out_p = jnp.pad(eps_out.astype(jnp.float32), (0, Np - N))
    b_eff = jnp.pad((bias_mu + bias_sigma * eps_out).astype(jnp.float32),
                    (0, Np - N))
    # Single lane-dense row block: row 0 = eps_out, row 1 = b_eff (8 sublanes
    # for clean (8,128)-aligned tiling; remaining rows are zero).
    rows = jnp.zeros((8, Np), jnp.float32).at[0].set(eps_out_p).at[1].set(b_eff)

    return dict(wmu_t=wmu_t, wsig_t=wsig_t, eps_in=eps_in_col, rows=rows,
                in_features=K, out_features=N)


def noisy_linear_prepared(x, prep, *, tm_max=256, tn_max=512, tk_max=1024):
    """Forward pass using pre-prepared (padded/transposed/cast) operands."""
    B, K = x.shape
    assert K == prep["in_features"], "in_features mismatch"
    N = prep["out_features"]
    Kp, Np = prep["wmu_t"].shape
    Mp = _round_up(B, 8)

    # Tiles are 8/128-multiples that divide the rounded dims -> no zero-padded
    # weight traffic or MXU work beyond the <128 remainder.
    tm = _pick_tile(Mp, tm_max, 8)
    tn = _pick_tile(Np, tn_max, 128)
    tk = _pick_tile(Kp, tk_max, 128)

    # v7x: make sure both TensorCores get work along a "parallel" axis when
    # the layer is small enough that the (M, N) grid would collapse to 1x1.
    if (Mp // tm == 1) and (Np // tn == 1):
        if Np >= 256:
            tn = _pick_tile(Np, Np // 2, 128)
        elif Mp >= 16:
            tm = _pick_tile(Mp, Mp // 2, 8)

    xp = jnp.pad(x, ((0, Mp - B), (0, Kp - K)))
    grid = (Mp // tm, Np // tn, Kp // tk)

    out = pl.pallas_call(
        noisy_linear_kernel,
        out_shape=jax.ShapeDtypeStruct((Mp, Np), x.dtype),
        grid_spec=pltpu.PrefetchScalarGridSpec(
            num_scalar_prefetch=0,
            grid=grid,
            in_specs=[
                pl.BlockSpec((tm, tk), lambda i, j, k: (i, k)),   # x
                pl.BlockSpec((tk, tn), lambda i, j, k: (k, j)),   # W_mu.T
                pl.BlockSpec((tk, tn), lambda i, j, k: (k, j)),   # W_sigma.T
                pl.BlockSpec((tk, 1), lambda i, j, k: (k, 0)),    # eps_in column
                pl.BlockSpec((8, tn), lambda i, j, k: (0, j)),    # [eps_out; b_eff]
            ],
            out_specs=pl.BlockSpec((tm, tn), lambda i, j, k: (i, j)),
            scratch_shapes=[pltpu.VMEM((tm, tn), jnp.float32)],
        ),
        compiler_params=pltpu.CompilerParams(
            dimension_semantics=("parallel", "parallel", "arbitrary"),
            # Worst-case double-buffered footprint ~11 MiB (bf16 weights,
            # tm=256/tn=512/tk=1024); 32 MiB leaves headroom on every
            # generation, including v7x's 64 MiB physical VMEM.
            vmem_limit_bytes=32 * 1024 * 1024,
        ),
    )(xp, prep["wmu_t"], prep["wsig_t"], prep["eps_in"], prep["rows"])

    return out[:B, :N]


def noisy_linear(x, weight_mu, weight_sigma, bias_mu, bias_sigma,
                 eps_in, eps_out, *, weight_dtype=jnp.bfloat16, **tile_kwargs):
    """Convenience one-shot forward.

    For repeated forwards with the same parameters/noise, call
    prepare_noisy_linear(...) once and reuse noisy_linear_prepared(...).
    """
    prep = prepare_noisy_linear(weight_mu, weight_sigma, bias_mu, bias_sigma,
                                eps_in, eps_out, weight_dtype=weight_dtype)
    return noisy_linear_prepared(x, prep, **tile_kwargs)


# ---------------------------------------------------------------------------
# Parameter / noise initialization mirroring the PyTorch module (plain JAX).
# ---------------------------------------------------------------------------
def scale_noise(key, size):
    """Factorized gaussian noise: sign(x) * sqrt(|x|)."""
    x = jax.random.normal(key, (size,), dtype=jnp.float32)
    return jnp.sign(x) * jnp.sqrt(jnp.abs(x))


def init_noisy_linear_params(key, in_features, out_features, std_init=0.5):
    k_wmu, k_bmu, k_ein, k_eout = jax.random.split(key, 4)
    mu_range = 1.0 / math.sqrt(in_features)

    weight_mu = jax.random.uniform(
        k_wmu, (out_features, in_features), jnp.float32, -mu_range, mu_range)
    weight_sigma = jnp.full((out_features, in_features),
                            std_init / math.sqrt(in_features), jnp.float32)
    bias_mu = jax.random.uniform(
        k_bmu, (out_features,), jnp.float32, -mu_range, mu_range)
    bias_sigma = jnp.full((out_features,),
                          std_init / math.sqrt(out_features), jnp.float32)

    eps_in = scale_noise(k_ein, in_features)
    eps_out = scale_noise(k_eout, out_features)

    return dict(weight_mu=weight_mu, weight_sigma=weight_sigma,
                bias_mu=bias_mu, bias_sigma=bias_sigma,
                eps_in=eps_in, eps_out=eps_out)


def _reference(x, p):
    w_eps = jnp.outer(p["eps_out"], p["eps_in"])       # epsilon_out.ger(epsilon_in)
    w_eff = p["weight_mu"] + p["weight_sigma"] * w_eps
    b_eff = p["bias_mu"] + p["bias_sigma"] * p["eps_out"]
    return x @ w_eff.T + b_eff


if __name__ == "__main__":
    key = jax.random.PRNGKey(0)
    k1, k2, k3, k4 = jax.random.split(key, 4)

    # --- Small shapes exercising the padding path (none are 8/128-multiples).
    B, IN, OUT = 6, 40, 24
    params = init_noisy_linear_params(k1, IN, OUT)
    x = jax.random.normal(k2, (B, IN), dtype=jnp.float32)
    y_ref = _reference(x, params)

    # Exact f32 path (strict tolerance).
    y_f32 = noisy_linear(x, params["weight_mu"], params["weight_sigma"],
                         params["bias_mu"], params["bias_sigma"],
                         params["eps_in"], params["eps_out"],
                         weight_dtype=jnp.float32)
    jax.block_until_ready(y_f32)
    assert y_f32.shape == (B, OUT)
    assert jnp.allclose(y_f32, y_ref, atol=1e-5, rtol=1e-5), "f32 small-shape mismatch"

    # Default bf16 weight-streaming path: prepare once, reuse across forwards.
    prep_bf16 = prepare_noisy_linear(
        params["weight_mu"], params["weight_sigma"],
        params["bias_mu"], params["bias_sigma"],
        params["eps_in"], params["eps_out"])
    y_bf16 = noisy_linear_prepared(x, prep_bf16)
    y_bf16_b = noisy_linear_prepared(x * 2.0, prep_bf16)   # cached prep reused
    jax.block_until_ready((y_bf16, y_bf16_b))
    assert jnp.allclose(y_bf16, y_ref, atol=3e-2, rtol=3e-2), "bf16 path mismatch"

    # --- Medium shape forced onto a multi-step (M, N, K) grid via small tile
    #     caps, to validate the accumulator / init / finalize logic (f32).
    B2, IN2, OUT2 = 10, 320, 200
    params2 = init_noisy_linear_params(k3, IN2, OUT2)
    x2 = jax.random.normal(k4, (B2, IN2), dtype=jnp.float32)
    prep2 = prepare_noisy_linear(
        params2["weight_mu"], params2["weight_sigma"],
        params2["bias_mu"], params2["bias_sigma"],
        params2["eps_in"], params2["eps_out"], weight_dtype=jnp.float32)
    y2 = noisy_linear_prepared(x2, prep2, tm_max=8, tn_max=128, tk_max=128)
    jax.block_until_ready(y2)
    y2_ref = _reference(x2, params2)
    assert y2.shape == (B2, OUT2)
    assert jnp.allclose(y2, y2_ref, atol=1e-4, rtol=1e-4), "f32 multi-tile grid mismatch"

    # Same multi-tile grid with bf16 weights (looser tolerance).
    prep2_bf16 = prepare_noisy_linear(
        params2["weight_mu"], params2["weight_sigma"],
        params2["bias_mu"], params2["bias_sigma"],
        params2["eps_in"], params2["eps_out"])
    y2_bf16 = noisy_linear_prepared(x2, prep2_bf16, tm_max=8, tn_max=128, tk_max=128)
    jax.block_until_ready(y2_bf16)
    assert jnp.allclose(y2_bf16, y2_ref, atol=5e-2, rtol=5e-2), "bf16 multi-tile mismatch"

    print("KERNEL_OK")
</pallas_src>

<mosaic_0001>
module attributes {stable_mosaic.version = 11 : i64} {
  func.func @noisy_linear_kernel(%arg0: i32, %arg1: i32, %arg2: i32, %arg3: memref<8x128xf32, #tpu.memory_space<vmem>>, %arg4: memref<128x128xf32, #tpu.memory_space<vmem>>, %arg5: memref<128x128xf32, #tpu.memory_space<vmem>>, %arg6: memref<128x1xf32, #tpu.memory_space<vmem>>, %arg7: memref<8x128xf32, #tpu.memory_space<vmem>>, %arg8: memref<8x128xf32, #tpu.memory_space<vmem>>, %arg9: memref<8x128xf32, #tpu.memory_space<vmem>>) attributes {dimension_semantics = [#tpu.dimension_semantics<parallel>, #tpu.dimension_semantics<parallel>, #tpu.dimension_semantics<arbitrary>], iteration_bounds = array<i64: 1, 1, 1>, scalar_prefetch = 0 : i64, scratch_operands = 1 : i64, tpu.core_type = #tpu.core_type<tc>, window_params = [{transform_indices = @transform_0, window_bounds = array<i64: 8, 128>}, {transform_indices = @transform_1, window_bounds = array<i64: 128, 128>}, {transform_indices = @transform_2, window_bounds = array<i64: 128, 128>}, {transform_indices = @transform_3, window_bounds = array<i64: 128, 1>}, {transform_indices = @transform_4, window_bounds = array<i64: 8, 128>}, {transform_indices = @transform_5, window_bounds = array<i64: 8, 128>}]} {
    %c0_i32 = arith.constant 0 : i32
    %0 = arith.cmpi eq, %arg2, %c0_i32 : i32
    %1 = arith.extui %0 : i1 to i32
    %c0_i32_0 = arith.constant 0 : i32
    %2 = arith.cmpi ne, %1, %c0_i32_0 : i32
    scf.if %2 {
      %cst_16 = arith.constant 0.000000e+00 : f32
      %20 = vector.broadcast %cst_16 : f32 to vector<8x128xf32>
      %c0_17 = arith.constant 0 : index
      %c0_18 = arith.constant 0 : index
      %21 = vector.load %arg9[%c0_17, %c0_18] : memref<8x128xf32, #tpu.memory_space<vmem>>, vector<8x128xf32>
      tpu.vector_store %arg9[%c0_17, %c0_18], %20 {strides = array<i32>} : memref<8x128xf32, #tpu.memory_space<vmem>>, vector<8x128xf32>,
    } else {
    }
    %c0 = arith.constant 0 : index
    %c0_1 = arith.constant 0 : index
    %3 = vector.load %arg4[%c0, %c0_1] : memref<128x128xf32, #tpu.memory_space<vmem>>, vector<128x128xf32>
    %c0_2 = arith.constant 0 : index
    %c0_3 = arith.constant 0 : index
    %4 = vector.load %arg5[%c0_2, %c0_3] : memref<128x128xf32, #tpu.memory_space<vmem>>, vector<128x128xf32>
    %c0_4 = arith.constant 0 : index
    %c0_5 = arith.constant 0 : index
    %5 = vector.load %arg6[%c0_4, %c0_5] : memref<128x1xf32, #tpu.memory_space<vmem>>, vector<128x1xf32>
    %c0_6 = arith.constant 0 : index
    %c0_7 = arith.constant 0 : index
    %6 = vector.load %arg7[%c0_6, %c0_7] : memref<8x128xf32, #tpu.memory_space<vmem>>, vector<1x128xf32>
    %7 = vector.broadcast %5 : vector<128x1xf32> to vector<128x128xf32>
    %8 = arith.mulf %4, %7 : vector<128x128xf32>
    %9 = vector.broadcast %6 : vector<1x128xf32> to vector<128x128xf32>
    %10 = arith.mulf %8, %9 : vector<128x128xf32>
    %11 = arith.addf %10, %3 : vector<128x128xf32>
    %c0_8 = arith.constant 0 : index
    %c0_9 = arith.constant 0 : index
    %12 = vector.load %arg3[%c0_8, %c0_9] : memref<8x128xf32, #tpu.memory_space<vmem>>, vector<8x128xf32>
    %c0_10 = arith.constant 0 : index
    %c0_11 = arith.constant 0 : index
    %13 = vector.load %arg9[%c0_10, %c0_11] : memref<8x128xf32, #tpu.memory_space<vmem>>, vector<8x128xf32>
    %cst = arith.constant dense<0.000000e+00> : vector<8x128xf32>
    %14 = tpu.matmul %12, %11, %cst {dimension_numbers = #tpu.dot_dimension_numbers<[1], [0], [0], [1], [0, 0, 1, 1], [], []>} : vector<8x128xf32>, vector<128x128xf32>, vector<8x128xf32> -> vector<8x128xf32>
    %15 = arith.addf %13, %14 : vector<8x128xf32>
    %c0_12 = arith.constant 0 : index
    %c0_13 = arith.constant 0 : index
    %16 = vector.load %arg9[%c0_12, %c0_13] : memref<8x128xf32, #tpu.memory_space<vmem>>, vector<8x128xf32>
    tpu.vector_store %arg9[%c0_12, %c0_13], %15 {strides = array<i32>} : memref<8x128xf32, #tpu.memory_space<vmem>>, vector<8x128xf32>,
    %c0_i32_14 = arith.constant 0 : i32
    %17 = arith.cmpi eq, %arg2, %c0_i32_14 : i32
    %18 = arith.extui %17 : i1 to i32
    %c0_i32_15 = arith.constant 0 : i32
    %19 = arith.cmpi ne, %18, %c0_i32_15 : i32
    scf.if %19 {
      %c1 = arith.constant 1 : index
      %c0_16 = arith.constant 0 : index
      %20 = vector.load %arg7[%c1, %c0_16] : memref<8x128xf32, #tpu.memory_space<vmem>>, vector<1x128xf32>
      %c0_17 = arith.constant 0 : index
      %c0_18 = arith.constant 0 : index
      %21 = vector.load %arg9[%c0_17, %c0_18] : memref<8x128xf32, #tpu.memory_space<vmem>>, vector<8x128xf32>
      %22 = vector.broadcast %20 : vector<1x128xf32> to vector<8x128xf32>
      %23 = arith.addf %21, %22 : vector<8x128xf32>
      %c0_19 = arith.constant 0 : index
      %c0_20 = arith.constant 0 : index
      %24 = vector.load %arg8[%c0_19, %c0_20] : memref<8x128xf32, #tpu.memory_space<vmem>>, vector<8x128xf32>
      tpu.vector_store %arg8[%c0_19, %c0_20], %23 {strides = array<i32>} : memref<8x128xf32, #tpu.memory_space<vmem>>, vector<8x128xf32>,
    } else {
    }
    return
  }
  func.func @transform_0(%arg0: i32, %arg1: i32, %arg2: i32) -> (i32, i32) {
    %c0_i32 = arith.constant 0 : i32
    return %arg0, %arg2 : i32, i32
  }
  func.func @transform_1(%arg0: i32, %arg1: i32, %arg2: i32) -> (i32, i32) {
    %c0_i32 = arith.constant 0 : i32
    return %arg2, %arg1 : i32, i32
  }
  func.func @transform_2(%arg0: i32, %arg1: i32, %arg2: i32) -> (i32, i32) {
    %c0_i32 = arith.constant 0 : i32
    return %arg2, %arg1 : i32, i32
  }
  func.func @transform_3(%arg0: i32, %arg1: i32, %arg2: i32) -> (i32, i32) {
    %c0_i32 = arith.constant 0 : i32
    %c0_i32_0 = arith.constant 0 : i32
    return %arg2, %c0_i32 : i32, i32
  }
  func.func @transform_4(%arg0: i32, %arg1: i32, %arg2: i32) -> (i32, i32) {
    %c0_i32 = arith.constant 0 : i32
    %c0_i32_0 = arith.constant 0 : i32
    return %c0_i32, %arg1 : i32, i32
  }
  func.func @transform_5(%arg0: i32, %arg1: i32, %arg2: i32) -> (i32, i32) {
    %c0_i32 = arith.constant 0 : i32
    return %arg0, %arg1 : i32, i32
  }
}

</mosaic_0001>

<llo_original>
// kernel: tpu_custom_call.1
$region0: #{tpu_custom_call.1}
  #allocation0 [shape = 'u32[]', space=smem, size = 0x4, offset = 0x4, fixed_abs, tag = 'smem constant byte address 0x4 - core index']
  #allocation1 [shape = 'u32[144,128]{1,0:T(1,128)}', space=vmem, size = 0x12000, scoped, tag = 'internal scratch']
  #allocation2 [shape = 'f32[8,128]{1,0:T(8,128)}', space=vmem, size = 0x1000, scoped, tag = 'scratch operand']
  %s0 = inlined_call_operand.hbm [shape: f32[8,128], index: 0, kind: input, shape index: {}]
  %s1 = inlined_call_operand.vmem [shape: f32[128,128], index: 1, kind: input, shape index: {}]
  %s2 = inlined_call_operand.hbm [shape: f32[128,128], index: 2, kind: input, shape index: {}]
  %s3 = inlined_call_operand.vmem [shape: f32[128,1], index: 3, kind: input, shape index: {}]
  %s4 = inlined_call_operand.vmem [shape: f32[8,128], index: 4, kind: input, shape index: {}]
  %s5 = inlined_call_operand.hbm [shape: f32[8,128], index: 5, kind: output, shape index: {}]
  %s6 = sld [smem:[#allocation0]]
  $region46: #{tpu_custom_call.1} parent=0
    _
  %s8 = ssub.s32 1, %s6
  %s9 = scalar_select 0, %s8, %s6
  $region1: #{tpu_custom_call.1} parent=0
    #allocation3 [shape = 'u8[4096]{0}', space=vmem, size = 0x1000, scoped, tag = 'input window, operand 0, single buffered']
    #allocation4 [shape = 's32[1]{0}', space=sflag, size = 0x4, scoped, tag = 'scoped memory for tpu_custom_call.1']
    #allocation5 [shape = 's32[1]{0}', space=sflag, size = 0x4, scoped, tag = 'scoped memory for tpu_custom_call.1']
    #allocation6 [shape = 'u8[65536]{0}', space=vmem, size = 0x10000, scoped, tag = 'input window, operand 2, single buffered']
    #allocation7 [shape = 's32[1]{0}', space=sflag, size = 0x4, scoped, tag = 'scoped memory for tpu_custom_call.1']
    #allocation8 [shape = 'u8[4096]{0}', space=vmem, size = 0x1000, scoped, tag = 'output window, operand 0, single buffered']
    %10 = vsyncpa [#allocation4], 0
    %11 = vsyncpa [#allocation7], 0
    %12 = vsyncpa [#allocation5], 0
    // Predicated region
    $region2: #{tpu_custom_call.1} parent=1 // pred_check
      _
    $region3: #{tpu_custom_call.1} parent=1 // pred_check_branch
      %14 = sbr.rel (0) target = $region5
    $region4: #{tpu_custom_call.1} parent=1 // pred_region
      %s16 = ssub.s32 128, 128
      %17 = vsyncadd [#allocation4], %s16
      %s19 = sshll.u32 [#allocation3], 4
      %s20 = int_to_ptr.vmem [resolvable:$true] %s19
      %22 = dma.hbm_to_vmem [thread:$0]  %s0, 128, %s20, [#allocation4]
    $region5: #{tpu_custom_call.1} parent=1 // pred_fallthru
      _
    // Predicated region
    $region6: #{tpu_custom_call.1} parent=1 // pred_check
      _
    $region7: #{tpu_custom_call.1} parent=1 // pred_check_branch
      %24 = sbr.rel (0) target = $region9
    $region8: #{tpu_custom_call.1} parent=1 // pred_region
      _
    $region9: #{tpu_custom_call.1} parent=1 // pred_fallthru
      _
    // Predicated region
    $region10: #{tpu_custom_call.1} parent=1 // pred_check
      _
    $region11: #{tpu_custom_call.1} parent=1 // pred_check_branch
      %26 = sbr.rel (0) target = $region13
    $region12: #{tpu_custom_call.1} parent=1 // pred_region
      %s28 = ssub.s32 2048, 2048
      %29 = vsyncadd [#allocation7], %s28
      %s30 = sshll.u32 [#allocation6], 4
      %s31 = int_to_ptr.vmem [resolvable:$true] %s30
      %36 = dma.hbm_to_vmem [thread:$0]  %s2, 2048, %s31, [#allocation7], 128, 128, 8
    $region13: #{tpu_custom_call.1} parent=1 // pred_fallthru
      _
    // Predicated region
    $region14: #{tpu_custom_call.1} parent=1 // pred_check
      _
    $region15: #{tpu_custom_call.1} parent=1 // pred_check_branch
      %38 = sbr.rel (0) target = $region17
    $region16: #{tpu_custom_call.1} parent=1 // pred_region
      _
    $region17: #{tpu_custom_call.1} parent=1 // pred_fallthru
      _
    // Predicated region
    $region18: #{tpu_custom_call.1} parent=1 // pred_check
      _
    $region19: #{tpu_custom_call.1} parent=1 // pred_check_branch
      %40 = sbr.rel (0) target = $region21
    $region20: #{tpu_custom_call.1} parent=1 // pred_region
      _
    $region21: #{tpu_custom_call.1} parent=1 // pred_fallthru
      _
    // Predicated region
    $region22: #{tpu_custom_call.1} parent=1 // pred_check
      _
    $region23: #{tpu_custom_call.1} parent=1 // pred_check_branch
      %42 = sbr.rel (0) target = $region25
    $region24: #{tpu_custom_call.1} parent=1 // pred_region
      %43 = dma.done [#allocation4], 128
    $region25: #{tpu_custom_call.1} parent=1 // pred_fallthru
      _
    // Predicated region
    $region26: #{tpu_custom_call.1} parent=1 // pred_check
      _
    $region27: #{tpu_custom_call.1} parent=1 // pred_check_branch
      %45 = sbr.rel (0) target = $region29
    $region28: #{tpu_custom_call.1} parent=1 // pred_region
      %46 = dma.done [#allocation7], 2048
    $region29: #{tpu_custom_call.1} parent=1 // pred_fallthru
      _
    %p47 = scmp.eq.s32.totalorder 0, 0
    // Predicated region
    $region30: #{tpu_custom_call.1} parent=1 // pred_check
      %p48 = pneg %p47
    $region31: #{tpu_custom_call.1} parent=1 // pred_check_branch
      %50 = sbr.rel (%p48) target = $region33
    $region32: #{tpu_custom_call.1} parent=1 // pred_region
      %51 = vst [vmem:[#allocation2] sm:$0xff] 0.0
    $region33: #{tpu_custom_call.1} parent=1 // pred_fallthru
      _
    %v52 = vld [vmem:[%s1] sm:$0xff]
    %v53 = vld [vmem:[%s1 + $0x8] sm:$0xff]
    %v54 = vld [vmem:[%s1 + $0x10] sm:$0xff]
    %v55 = vld [vmem:[%s1 + $0x18] sm:$0xff]
    %v56 = vld [vmem:[%s1 + $0x20] sm:$0xff]
    %v57 = vld [vmem:[%s1 + $0x28] sm:$0xff]
    %v58 = vld [vmem:[%s1 + $0x30] sm:$0xff]
    %v59 = vld [vmem:[%s1 + $0x38] sm:$0xff]
    %v60 = vld [vmem:[%s1 + $0x40] sm:$0xff]
    %v61 = vld [vmem:[%s1 + $0x48] sm:$0xff]
    %v62 = vld [vmem:[%s1 + $0x50] sm:$0xff]
    %v63 = vld [vmem:[%s1 + $0x58] sm:$0xff]
    %v64 = vld [vmem:[%s1 + $0x60] sm:$0xff]
    %v65 = vld [vmem:[%s1 + $0x68] sm:$0xff]
    %v66 = vld [vmem:[%s1 + $0x70] sm:$0xff]
    %v67 = vld [vmem:[%s1 + $0x78] sm:$0xff]
    %v68 = vld [vmem:[#allocation6] sm:$0xff]
    %v69 = vld [vmem:[#allocation6 + $0x8] sm:$0xff]
    %v70 = vld [vmem:[#allocation6 + $0x10] sm:$0xff]
    %v71 = vld [vmem:[#allocation6 + $0x18] sm:$0xff]
    %v72 = vld [vmem:[#allocation6 + $0x20] sm:$0xff]
    %v73 = vld [vmem:[#allocation6 + $0x28] sm:$0xff]
    %v74 = vld [vmem:[#allocation6 + $0x30] sm:$0xff]
    %v75 = vld [vmem:[#allocation6 + $0x38] sm:$0xff]
    %v76 = vld [vmem:[#allocation6 + $0x40] sm:$0xff]
    %v77 = vld [vmem:[#allocation6 + $0x48] sm:$0xff]
    %v78 = vld [vmem:[#allocation6 + $0x50] sm:$0xff]
    %v79 = vld [vmem:[#allocation6 + $0x58] sm:$0xff]
    %v80 = vld [vmem:[#allocation6 + $0x60] sm:$0xff]
    %v81 = vld [vmem:[#allocation6 + $0x68] sm:$0xff]
    %v82 = vld [vmem:[#allocation6 + $0x70] sm:$0xff]
    %v83 = vld [vmem:[#allocation6 + $0x78] sm:$0xff]
    %v84 = vld [vmem:[%s3] sm:$0xff]
    %v85 = vld [vmem:[%s3 + $0x8] sm:$0xff]
    %v86 = vld [vmem:[%s3 + $0x10] sm:$0xff]
    %v87 = vld [vmem:[%s3 + $0x18] sm:$0xff]
    %v88 = vld [vmem:[%s3 + $0x20] sm:$0xff]
    %v89 = vld [vmem:[%s3 + $0x28] sm:$0xff]
    %v90 = vld [vmem:[%s3 + $0x30] sm:$0xff]
    %v91 = vld [vmem:[%s3 + $0x38] sm:$0xff]
    %v92 = vld [vmem:[%s3 + $0x40] sm:$0xff]
    %v93 = vld [vmem:[%s3 + $0x48] sm:$0xff]
    %v94 = vld [vmem:[%s3 + $0x50] sm:$0xff]
    %v95 = vld [vmem:[%s3 + $0x58] sm:$0xff]
    %v96 = vld [vmem:[%s3 + $0x60] sm:$0xff]
    %v97 = vld [vmem:[%s3 + $0x68] sm:$0xff]
    %v98 = vld [vmem:[%s3 + $0x70] sm:$0xff]
    %v99 = vld [vmem:[%s3 + $0x78] sm:$0xff]
    %v100 = vld [vmem:[%s4] sm:$0x1]
    %102 = vset.pattern.permute.xlu0 0
    %103 = vperm.xlu0 %102, %v84
    %v104 = vpop.permute.xlu0 %103
    %107 = vset.pattern.permute.xlu0 0
    %108 = vperm.xlu0 %107, %v85
    %v109 = vpop.permute.xlu0 %108
    %112 = vset.pattern.permute.xlu0 0
    %113 = vperm.xlu0 %112, %v86
    %v114 = vpop.permute.xlu0 %113
    %117 = vset.pattern.permute.xlu0 0
    %118 = vperm.xlu0 %117, %v87
    %v119 = vpop.permute.xlu0 %118
    %122 = vset.pattern.permute.xlu0 0
    %123 = vperm.xlu0 %122, %v88
    %v124 = vpop.permute.xlu0 %123
    %127 = vset.pattern.permute.xlu0 0
    %128 = vperm.xlu0 %127, %v89
    %v129 = vpop.permute.xlu0 %128
    %132 = vset.pattern.permute.xlu0 0
    %133 = vperm.xlu0 %132, %v90
    %v134 = vpop.permute.xlu0 %133
    %137 = vset.pattern.permute.xlu0 0
    %138 = vperm.xlu0 %137, %v91
    %v139 = vpop.permute.xlu0 %138
    %142 = vset.pattern.permute.xlu0 0
    %143 = vperm.xlu0 %142, %v92
    %v144 = vpop.permute.xlu0 %143
    %147 = vset.pattern.permute.xlu0 0
    %148 = vperm.xlu0 %147, %v93
    %v149 = vpop.permute.xlu0 %148
    %152 = vset.pattern.permute.xlu0 0
    %153 = vperm.xlu0 %152, %v94
    %v154 = vpop.permute.xlu0 %153
    %157 = vset.pattern.permute.xlu0 0
    %158 = vperm.xlu0 %157, %v95
    %v159 = vpop.permute.xlu0 %158
    %162 = vset.pattern.permute.xlu0 0
    %163 = vperm.xlu0 %162, %v96
    %v164 = vpop.permute.xlu0 %163
    %167 = vset.pattern.permute.xlu0 0
    %168 = vperm.xlu0 %167, %v97
    %v169 = vpop.permute.xlu0 %168
    %172 = vset.pattern.permute.xlu0 0
    %173 = vperm.xlu0 %172, %v98
    %v174 = vpop.permute.xlu0 %173
    %177 = vset.pattern.permute.xlu0 0
    %178 = vperm.xlu0 %177, %v99
    %v179 = vpop.permute.xlu0 %178
    %v181 = vmul.f32 %v68, %v104
    %v182 = vmul.f32 %v69, %v109
    %v183 = vmul.f32 %v70, %v114
    %v184 = vmul.f32 %v71, %v119
    %v185 = vmul.f32 %v72, %v124
    %v186 = vmul.f32 %v73, %v129
    %v187 = vmul.f32 %v74, %v134
    %v188 = vmul.f32 %v75, %v139
    %v189 = vmul.f32 %v76, %v144
    %v190 = vmul.f32 %v77, %v149
    %v191 = vmul.f32 %v78, %v154
    %v192 = vmul.f32 %v79, %v159
    %v193 = vmul.f32 %v80, %v164
    %v194 = vmul.f32 %v81, %v169
    %v195 = vmul.f32 %v82, %v174
    %v196 = vmul.f32 %v83, %v179
    %v197 = vlaneseq
    %v198 = vshrl.u32 %v197, 7
    %v199 = vsub.s32 0, %v198
    %v200 = vrot.slane %v100, %v199
    %v201 = vmul.f32 %v181, %v200
    %v202 = vmul.f32 %v182, %v200
    %v203 = vmul.f32 %v183, %v200
    %v204 = vmul.f32 %v184, %v200
    %v205 = vmul.f32 %v185, %v200
    %v206 = vmul.f32 %v186, %v200
    %v207 = vmul.f32 %v187, %v200
    %v208 = vmul.f32 %v188, %v200
    %v209 = vmul.f32 %v189, %v200
    %v210 = vmul.f32 %v190, %v200
    %v211 = vmul.f32 %v191, %v200
    %v212 = vmul.f32 %v192, %v200
    %v213 = vmul.f32 %v193, %v200
    %v214 = vmul.f32 %v194, %v200
    %v215 = vmul.f32 %v195, %v200
    %v216 = vmul.f32 %v196, %v200
    %v217 = vadd.f32 %v201, %v52
    %v218 = vadd.f32 %v202, %v53
    %v219 = vadd.f32 %v203, %v54
    %v220 = vadd.f32 %v204, %v55
    %v221 = vadd.f32 %v205, %v56
    %v222 = vadd.f32 %v206, %v57
    %v223 = vadd.f32 %v207, %v58
    %v224 = vadd.f32 %v208, %v59
    %v225 = vadd.f32 %v209, %v60
    %v226 = vadd.f32 %v210, %v61
    %v227 = vadd.f32 %v211, %v62
    %v228 = vadd.f32 %v212, %v63
    %v229 = vadd.f32 %v213, %v64
    %v230 = vadd.f32 %v214, %v65
    %v231 = vadd.f32 %v215, %v66
    %v232 = vadd.f32 %v216, %v67
    %v233 = vld [vmem:[#allocation3] sm:$0xff]
    %v234 = vld [vmem:[#allocation2] sm:$0xff]
    %235 = vmatprep.subr.mxu0 0.0
    %236 = vmatpush1.msra.mxu0 %v217
    %237 = vmatprep.subr.mxu0 0.0
    %238 = vmatpush1.msra.mxu0 %v218
    %239 = vmatprep.subr.mxu0 0.0
    %240 = vmatpush1.msra.mxu0 %v219
    %241 = vmatprep.subr.mxu0 0.0
    %242 = vmatpush1.msra.mxu0 %v220
    %243 = vmatprep.subr.mxu0 0.0
    %244 = vmatpush1.msra.mxu0 %v221
    %245 = vmatprep.subr.mxu0 0.0
    %246 = vmatpush1.msra.mxu0 %v222
    %247 = vmatprep.subr.mxu0 0.0
    %248 = vmatpush1.msra.mxu0 %v223
    %249 = vmatprep.subr.mxu0 0.0
    %250 = vmatpush1.msra.mxu0 %v224
    %251 = vmatprep.subr.mxu0 0.0
    %252 = vmatpush1.msra.mxu0 %v225
    %253 = vmatprep.subr.mxu0 0.0
    %254 = vmatpush1.msra.mxu0 %v226
    %255 = vmatprep.subr.mxu0 0.0
    %256 = vmatpush1.msra.mxu0 %v227
    %257 = vmatprep.subr.mxu0 0.0
    %258 = vmatpush1.msra.mxu0 %v228
    %259 = vmatprep.subr.mxu0 0.0
    %260 = vmatpush1.msra.mxu0 %v229
    %261 = vmatprep.subr.mxu0 0.0
    %262 = vmatpush1.msra.mxu0 %v230
    %263 = vmatprep.subr.mxu0 0.0
    %264 = vmatpush1.msra.mxu0 %v231
    %265 = vmatprep.subr.mxu0 0.0
    %266 = vmatpush1.msra.mxu0 %v232
    %267 = vmatprep.subr.mxu0 0.0
    %268 = vmatpush1.msra.mxu0 0.0
    %269 = vmatprep.subr.mxu0 0.0
    %270 = vmatpush1.msra.mxu0 0.0
    %271 = vmatprep.subr.mxu0 0.0
    %272 = vmatpush1.msra.mxu0 0.0
    %273 = vmatprep.subr.mxu0 0.0
    %274 = vmatpush1.msra.mxu0 0.0
    %275 = vmatprep.subr.mxu0 0.0
    %276 = vmatpush1.msra.mxu0 0.0
    %277 = vmatprep.subr.mxu0 0.0
    %278 = vmatpush1.msra.mxu0 0.0
    %279 = vmatprep.subr.mxu0 0.0
    %280 = vmatpush1.msra.mxu0 0.0
    %281 = vmatprep.subr.mxu0 0.0
    %282 = vmatpush1.msra.mxu0 0.0
    %283 = vmatprep.subr.mxu0 0.0
    %284 = vmatpush1.msra.mxu0 0.0
    %285 = vmatprep.subr.mxu0 0.0
    %286 = vmatpush1.msra.mxu0 0.0
    %287 = vmatprep.subr.mxu0 0.0
    %288 = vmatpush1.msra.mxu0 0.0
    %289 = vmatprep.subr.mxu0 0.0
    %290 = vmatpush1.msra.mxu0 0.0
    %291 = vmatprep.subr.mxu0 0.0
    %292 = vmatpush1.msra.mxu0 0.0
    %293 = vmatprep.subr.mxu0 0.0
    %294 = vmatpush1.msra.mxu0 0.0
    %295 = vmatprep.subr.mxu0 0.0
    %296 = vmatpush1.msra.mxu0 0.0
    %297 = vmatprep.subr.mxu0 0.0
    %298 = vmatpush1.msra.mxu0 0.0
    %299 = vmatprep.mubr.f32.mxu0 0.0
    %300 = vmatmul.mubr.f32.gmra.mrb[0].mxu0 %v233
    %v301 = vpop.f32.mrb[0].mxu0
    %v302 = vadd.f32 0.0, %v301
    %v303 = vpop.f32.mrb[0].mxu0
    %304 = vdwg.mxu0
    %v305 = vadd.f32 %v234, %v302
    %306 = vst [vmem:[#allocation2] sm:$0xff] %v305
    // Predicated region
    $region34: #{tpu_custom_call.1} parent=1 // pred_check
      %p307 = pneg %p47
    $region35: #{tpu_custom_call.1} parent=1 // pred_check_branch
      %309 = sbr.rel (%p307) target = $region37
    $region36: #{tpu_custom_call.1} parent=1 // pred_region
      %v310 = vld [vmem:[%s4 + $0x1] sm:$0x1]
      %v311 = vld [vmem:[#allocation2] sm:$0xff]
      %v312 = vlaneseq
      %v313 = vshrl.u32 %v312, 7
      %v314 = vsub.s32 0, %v313
      %v315 = vrot.slane %v310, %v314
      %v316 = vadd.f32 %v311, %v315
      %317 = vst [vmem:[#allocation8] sm:$0xff] %v316
    $region37: #{tpu_custom_call.1} parent=1 // pred_fallthru
      _
    // Predicated region
    $region38: #{tpu_custom_call.1} parent=1 // pred_check
      _
    $region39: #{tpu_custom_call.1} parent=1 // pred_check_branch
      %319 = sbr.rel (0) target = $region41
    $region40: #{tpu_custom_call.1} parent=1 // pred_region
      %s321 = ssub.s32 128, 128
      %322 = vsyncadd [#allocation5], %s321
      %s324 = sshll.u32 [#allocation8], 4
      %s325 = int_to_ptr.vmem [resolvable:$true] %s324
      %327 = dma.vmem_to_hbm [thread:$0]  %s325, 128, %s5, [#allocation5]
    $region41: #{tpu_custom_call.1} parent=1 // pred_fallthru
      _
    // Predicated region
    $region42: #{tpu_custom_call.1} parent=1 // pred_check
      _
    $region43: #{tpu_custom_call.1} parent=1 // pred_check_branch
      %329 = sbr.rel (0) target = $region45
    $region44: #{tpu_custom_call.1} parent=1 // pred_region
      %330 = dma.done [#allocation5], 128
    $region45: #{tpu_custom_call.1} parent=1 // pred_fallthru
      _
    %331 = vsyncpa [#allocation4], 1
    %332 = vsyncpa [#allocation7], 1
    %333 = vsyncpa [#allocation5], 1

</llo_original>
